<compile_context>
chip_gen: v5e
topology: v5e:2x2
jax: 0.10.0
libtpu: 0.0.40
codegen_flags: <defaults>
</compile_context>

<pallas_src>
import jax
import jax.numpy as jnp
from jax.experimental import pallas as pl
from jax.experimental.pallas import tpu as pltpu


def _concat_elu_pair(x):
    """Return (elu(x), elu(-x)) using a single exp per element.

    e = exp(-|x|) - 1:
      x > 0 : elu(x) = x ; elu(-x) = exp(-x) - 1 = e
      x <= 0: elu(x) = exp(x) - 1 = e ; elu(-x) = -x
    """
    em1 = jnp.exp(-jnp.abs(x)) - 1.0
    pos = x > 0
    return jnp.where(pos, x, em1), jnp.where(pos, em1, -x)


def _gated_resnet_kernel_fused(x_ref, w1t_ref, b1_ref, w2t_ref, b2_ref, o_ref):
    """Fused path (requires C % 16 == 0).

    x_ref: (C, T) — channels on sublanes, spatial tile on lanes.
    w1t: (C, 2C), w2t: (2C, 2C) transposed effective weights (h^T = W^T @ u^T).
    b1: (C, 1), b2: (2C, 1) f32 biases.
    """
    mm = w1t_ref.dtype
    C = b1_ref.shape[0]

    xp, xn = _concat_elu_pair(x_ref[...].astype(jnp.float32))
    u = jnp.concatenate([xp.astype(mm), xn.astype(mm)], axis=0)      # (2C, T)

    # conv_input: ONE dot, contraction over 2C in the MXU.
    h = jnp.dot(w1t_ref[...], u, preferred_element_type=jnp.float32) + b1_ref[...]

    hp, hn = _concat_elu_pair(h)
    v = jnp.concatenate([hp.astype(mm), hn.astype(mm)], axis=0)      # (2C, T)

    # Dropout2d(0.5): identity (eval-mode semantics).
    # conv_out: ONE dot; (2C, T) result split into gate halves by a
    # sublane-aligned slice (C % 16 == 0 guaranteed by the wrapper).
    y = jnp.dot(w2t_ref[...], v, preferred_element_type=jnp.float32) + b2_ref[...]
    a = y[:C, :]
    b = y[C:, :]

    # Residual: re-read x from the resident VMEM input tile (short live range).
    o_ref[...] = (x_ref[...].astype(jnp.float32)
                  + a * jax.nn.sigmoid(b)).astype(o_ref.dtype)


def _gated_resnet_kernel_split(x_ref,
                               w1p_ref, w1n_ref, b1_ref,
                               w2ap_ref, w2an_ref, b2a_ref,
                               w2bp_ref, w2bn_ref, b2b_ref,
                               o_ref):
    """Fallback path for channel counts not aligned to the sublane pack."""
    mm = w1p_ref.dtype

    xp, xn = _concat_elu_pair(x_ref[...].astype(jnp.float32))
    xp = xp.astype(mm)
    xn = xn.astype(mm)

    h = (jnp.dot(w1p_ref[...], xp, preferred_element_type=jnp.float32)
         + jnp.dot(w1n_ref[...], xn, preferred_element_type=jnp.float32)
         + b1_ref[...])

    hp, hn = _concat_elu_pair(h)
    hp = hp.astype(mm)
    hn = hn.astype(mm)

    # Dropout2d(0.5): identity (eval-mode semantics).
    a = (jnp.dot(w2ap_ref[...], hp, preferred_element_type=jnp.float32)
         + jnp.dot(w2an_ref[...], hn, preferred_element_type=jnp.float32)
         + b2a_ref[...])
    b = (jnp.dot(w2bp_ref[...], hp, preferred_element_type=jnp.float32)
         + jnp.dot(w2bn_ref[...], hn, preferred_element_type=jnp.float32)
         + b2b_ref[...])

    o_ref[...] = (x_ref[...].astype(jnp.float32)
                  + a * jax.nn.sigmoid(b)).astype(o_ref.dtype)


def _vmem_capacity_bytes():
    try:
        return int(pltpu.get_tpu_info().vmem_capacity_bytes)
    except Exception:
        return 64 * 1024 * 1024   # conservative (v7x per-TensorCore)


def _choose_tile(hw, C, io_itemsize, n_batch, tile_hw):
    """Pick (T, S): lane-tile size (multiple of 128) and number of spatial steps."""
    if tile_hw is None:
        vmem = _vmem_capacity_bytes()
        # Rough working set per lane column: in/out pipeline buffers
        # (2 streams x 2 buffers x io_itemsize) + in-kernel f32/bf16 temps
        # (~28 B per (channel, lane)).  Target ~half of VMEM.
        per_col = max(1, C * (4 * io_itemsize + 28))
        cap = (vmem // 2) // per_col
        cap = min(8192, max(512, cap))
    else:
        cap = tile_hw
    cap = max(128, (cap // 128) * 128)

    hw_pad = ((hw + 127) // 128) * 128        # lane-align
    T = min(cap, hw_pad)

    # v7x has 2 TensorCores: guarantee >= 2 parallel grid steps at batch 1.
    if n_batch == 1 and hw_pad > 128:
        half = (((hw_pad // 2) + 127) // 128) * 128
        T = min(T, half)

    S = (hw_pad + T - 1) // T
    return T, S


def gated_resnet_pallas(og_x_nchw, w1, b1, w2, b2, *, tile_hw=None,
                        matmul_dtype=jnp.bfloat16, io_dtype=None):
    """og_x_nchw: (N, C, H, W).
    w1: (2C, C) effective conv_input weight for x @ W, b1: (C,).
    w2: (2C, 2C) effective conv_out weight for x @ W, b2: (2C,).
    io_dtype: optional HBM activation dtype (e.g. jnp.bfloat16) for the
    HBM-bound production regime; output is returned in that dtype.
    Note: with bf16 matmul operands expect ~1e-2-relative drift vs. pure-f32
    PyTorch semantics at realistic C — that is precision, not a kernel bug."""
    N, C, H, W = og_x_nchw.shape
    HW = H * W
    out_dtype = io_dtype if io_dtype is not None else og_x_nchw.dtype

    # Free reshape: NCHW is contiguous, (N, C, H, W) -> (N, C, H*W).
    x3 = og_x_nchw.reshape(N, C, HW)
    if io_dtype is not None and x3.dtype != io_dtype:
        x3 = x3.astype(io_dtype)
    io_itemsize = jnp.dtype(x3.dtype).itemsize

    T, S = _choose_tile(HW, C, io_itemsize, N, tile_hw)
    HW_total = S * T
    if HW_total != HW:
        # Lane-pad so every store is a full-width (unmasked) vst; padded lanes
        # compute harmless zeros and are sliced off below.
        x3 = jnp.pad(x3, ((0, 0), (0, 0), (0, HW_total - HW)))

    md = matmul_dtype
    fused = (C % 16 == 0)   # sublane-aligned concat + gate split (bf16 pack=16)
    if fused:
        w1t = jnp.asarray(w1.T, md)                         # (C, 2C)
        w2t = jnp.asarray(w2.T, md)                         # (2C, 2C)
        b1c = b1.reshape(C, 1).astype(jnp.float32)
        b2c = b2.reshape(2 * C, 1).astype(jnp.float32)
        weights = (w1t, b1c, w2t, b2c)
        wshapes = [(C, 2 * C), (C, 1), (2 * C, 2 * C), (2 * C, 1)]
        kernel = _gated_resnet_kernel_fused
    else:
        w1p = jnp.asarray(w1[:C, :].T, md)     # applies to elu(x)
        w1n = jnp.asarray(w1[C:, :].T, md)     # applies to elu(-x)
        w2ap = jnp.asarray(w2[:C, :C].T, md)   # gate 'a', elu(h) branch
        w2an = jnp.asarray(w2[C:, :C].T, md)   # gate 'a', elu(-h) branch
        w2bp = jnp.asarray(w2[:C, C:].T, md)   # gate 'b', elu(h) branch
        w2bn = jnp.asarray(w2[C:, C:].T, md)   # gate 'b', elu(-h) branch
        b1c = b1.reshape(C, 1).astype(jnp.float32)
        b2a = b2[:C].reshape(C, 1).astype(jnp.float32)
        b2b = b2[C:].reshape(C, 1).astype(jnp.float32)
        weights = (w1p, w1n, b1c, w2ap, w2an, b2a, w2bp, w2bn, b2b)
        wshapes = [(C, C), (C, C), (C, 1), (C, C), (C, C), (C, 1),
                   (C, C), (C, C), (C, 1)]
        kernel = _gated_resnet_kernel_split

    def _const_spec(shape):
        # Grid-invariant operand: constant index_map => no re-DMA across steps.
        return pl.BlockSpec(shape, lambda n, s: (0, 0))

    vmem_cap = _vmem_capacity_bytes()
    vmem_limit = int(min(vmem_cap * 0.9, 120 * 1024 * 1024))

    out3 = pl.pallas_call(
        kernel,
        out_shape=jax.ShapeDtypeStruct((N, C, HW_total), out_dtype),
        grid_spec=pltpu.PrefetchScalarGridSpec(
            num_scalar_prefetch=0,
            grid=(N, S),
            in_specs=[pl.BlockSpec((None, C, T), lambda n, s: (n, 0, s))]
                     + [_const_spec(shp) for shp in wshapes],
            out_specs=pl.BlockSpec((None, C, T), lambda n, s: (n, 0, s)),
        ),
        compiler_params=pltpu.CompilerParams(
            dimension_semantics=("parallel", "parallel"),
            vmem_limit_bytes=vmem_limit,
        ),
    )(x3, *weights)

    if HW_total != HW:
        out3 = out3[:, :, :HW]
    return out3.reshape(N, C, H, W)


def make_weightnorm_linear(key, dim_in, dim_out):
    """Deterministic weight-norm linear params; returns effective (dim_in, dim_out)
    weight (already transposed for x @ W) and bias (dim_out,)."""
    kv, kb, kg = jax.random.split(key, 3)
    bound = 1.0 / jnp.sqrt(dim_in)
    v = jax.random.uniform(kv, (dim_out, dim_in), jnp.float32, -bound, bound)
    bias = jax.random.uniform(kb, (dim_out,), jnp.float32, -bound, bound)
    # weight_norm: w = g * v / ||v||  (norm over input dim, per output row)
    g = jax.random.uniform(kg, (dim_out, 1), jnp.float32, 0.5, 1.5)
    w_eff = g * v / jnp.linalg.norm(v, axis=1, keepdims=True)
    return w_eff.T, bias  # transposed so the math is x @ W


def _elu_ref(x):
    return jnp.where(x > 0, x, jnp.expm1(x))


def reference_forward(og_x, w1, b1, w2, b2, mm_dtype=jnp.float32):
    """Pure-JAX reference matching the PyTorch forward (eval mode, a=None),
    written in the original NHWC-flattened orientation (independent of the
    kernel's layout). `mm_dtype` controls the matmul-operand precision so the
    bf16 kernel path can be checked against matching semantics."""
    N, C, H, W = og_x.shape
    x = jnp.transpose(og_x, (0, 2, 3, 1)).reshape(-1, C).astype(jnp.float32)
    u = _elu_ref(jnp.concatenate([x, -x], axis=-1)).astype(mm_dtype)
    h = jnp.dot(u, w1.astype(mm_dtype), preferred_element_type=jnp.float32) + b1
    v = _elu_ref(jnp.concatenate([h, -h], axis=-1)).astype(mm_dtype)
    y = jnp.dot(v, w2.astype(mm_dtype), preferred_element_type=jnp.float32) + b2
    a, b = y[:, :C], y[:, C:]
    out = x + a * jax.nn.sigmoid(b)
    return jnp.transpose(out.reshape(N, H, W, C), (0, 3, 1, 2))


if __name__ == "__main__":
    key = jax.random.PRNGKey(0)
    keys = jax.random.split(key, 6)

    def run_case(C, matmul_dtype, io_dtype, atol, rtol, kx, kw1, kw2,
                 N=2, H=16, W=16):
        og_x = jax.random.normal(kx, (N, C, H, W), jnp.float32)
        w1, b1 = make_weightnorm_linear(kw1, 2 * C, C)
        w2, b2 = make_weightnorm_linear(kw2, 2 * C, 2 * C)

        out = gated_resnet_pallas(og_x, w1, b1, w2, b2,
                                  matmul_dtype=matmul_dtype, io_dtype=io_dtype)
        out = jax.block_until_ready(out)
        assert out.shape == og_x.shape

        ref_in = og_x if io_dtype is None else og_x.astype(io_dtype).astype(jnp.float32)
        ref = reference_forward(ref_in, w1, b1, w2, b2, mm_dtype=matmul_dtype)
        if io_dtype is not None:
            ref = ref.astype(io_dtype)
        ok = jnp.allclose(out.astype(jnp.float32), ref.astype(jnp.float32),
                          atol=atol, rtol=rtol)
        assert ok, f"mismatch: C={C}, matmul={matmul_dtype}, io={io_dtype}"

    # (2, 4, 16, 16): module's small shape; C=4 exercises the split-weight path.
    run_case(4, jnp.float32, None, 1e-5, 1e-5, keys[0], keys[1], keys[2])
    # bf16 MXU operands vs. a bf16-matched reference (single-exp ELU can flip a
    # bf16 rounding, so tolerance is a few ulps wider than the f32 check).
    run_case(4, jnp.bfloat16, None, 5e-3, 5e-3, keys[0], keys[1], keys[2])

    # C=16 exercises the fused (single-dot per conv) path.
    run_case(16, jnp.float32, None, 1e-4, 1e-4, keys[3], keys[4], keys[5])
    # Production-style path: bf16 MXU operands + bf16 activation I/O.
    run_case(16, jnp.bfloat16, jnp.bfloat16, 1e-1, 5e-2, keys[3], keys[4], keys[5])

    print("KERNEL_OK")
</pallas_src>

<mosaic_0001>
module attributes {stable_mosaic.version = 11 : i64} {
  func.func @_gated_resnet_kernel_split(%arg0: i32, %arg1: i32, %arg2: memref<1x4x256xf32, #tpu.memory_space<vmem>>, %arg3: memref<4x4xf32, #tpu.memory_space<vmem>>, %arg4: memref<4x4xf32, #tpu.memory_space<vmem>>, %arg5: memref<4x1xf32, #tpu.memory_space<vmem>>, %arg6: memref<4x4xf32, #tpu.memory_space<vmem>>, %arg7: memref<4x4xf32, #tpu.memory_space<vmem>>, %arg8: memref<4x1xf32, #tpu.memory_space<vmem>>, %arg9: memref<4x4xf32, #tpu.memory_space<vmem>>, %arg10: memref<4x4xf32, #tpu.memory_space<vmem>>, %arg11: memref<4x1xf32, #tpu.memory_space<vmem>>, %arg12: memref<1x4x256xf32, #tpu.memory_space<vmem>>) attributes {dimension_semantics = [#tpu.dimension_semantics<parallel>, #tpu.dimension_semantics<parallel>], iteration_bounds = array<i64: 2, 1>, scalar_prefetch = 0 : i64, scratch_operands = 0 : i64, tpu.core_type = #tpu.core_type<tc>, window_params = [{transform_indices = @transform_0, window_bounds = array<i64: 1, 4, 256>}, {pipeline_mode = #tpu.pipeline_mode<synchronous>, transform_indices = @transform_1, window_bounds = array<i64: 4, 4>}, {pipeline_mode = #tpu.pipeline_mode<synchronous>, transform_indices = @transform_2, window_bounds = array<i64: 4, 4>}, {pipeline_mode = #tpu.pipeline_mode<synchronous>, transform_indices = @transform_3, window_bounds = array<i64: 4, 1>}, {pipeline_mode = #tpu.pipeline_mode<synchronous>, transform_indices = @transform_4, window_bounds = array<i64: 4, 4>}, {pipeline_mode = #tpu.pipeline_mode<synchronous>, transform_indices = @transform_5, window_bounds = array<i64: 4, 4>}, {pipeline_mode = #tpu.pipeline_mode<synchronous>, transform_indices = @transform_6, window_bounds = array<i64: 4, 1>}, {pipeline_mode = #tpu.pipeline_mode<synchronous>, transform_indices = @transform_7, window_bounds = array<i64: 4, 4>}, {pipeline_mode = #tpu.pipeline_mode<synchronous>, transform_indices = @transform_8, window_bounds = array<i64: 4, 4>}, {pipeline_mode = #tpu.pipeline_mode<synchronous>, transform_indices = @transform_9, window_bounds = array<i64: 4, 1>}, {transform_indices = @transform_10, window_bounds = array<i64: 1, 4, 256>}]} {
    %c0 = arith.constant 0 : index
    %c0_0 = arith.constant 0 : index
    %c0_1 = arith.constant 0 : index
    %0 = vector.load %arg2[%c0, %c0_0, %c0_1] : memref<1x4x256xf32, #tpu.memory_space<vmem>>, vector<1x4x256xf32>
    %1 = vector.shape_cast %0 : vector<1x4x256xf32> to vector<4x256xf32>
    %2 = math.absf %1 : vector<4x256xf32>
    %cst = arith.constant 0.000000e+00 : f32
    %3 = vector.broadcast %cst : f32 to vector<4x256xf32>
    %4 = arith.subf %3, %2 : vector<4x256xf32>
    %5 = math.exp %4 : vector<4x256xf32>
    %cst_2 = arith.constant 1.000000e+00 : f32
    %6 = vector.broadcast %cst_2 : f32 to vector<4x256xf32>
    %7 = arith.subf %5, %6 : vector<4x256xf32>
    %cst_3 = arith.constant 0.000000e+00 : f32
    %8 = vector.broadcast %cst_3 : f32 to vector<4x256xf32>
    %9 = arith.cmpf ogt, %1, %8 : vector<4x256xf32>
    %10 = arith.select %9, %1, %7 : vector<4x256xi1>, vector<4x256xf32>
    %cst_4 = arith.constant 0.000000e+00 : f32
    %11 = vector.broadcast %cst_4 : f32 to vector<4x256xf32>
    %12 = arith.subf %11, %1 : vector<4x256xf32>
    %13 = arith.select %9, %7, %12 : vector<4x256xi1>, vector<4x256xf32>
    %c0_5 = arith.constant 0 : index
    %c0_6 = arith.constant 0 : index
    %14 = vector.load %arg3[%c0_5, %c0_6] : memref<4x4xf32, #tpu.memory_space<vmem>>, vector<4x4xf32>
    %cst_7 = arith.constant dense<0.000000e+00> : vector<4x256xf32>
    %15 = tpu.matmul %14, %10, %cst_7 {dimension_numbers = #tpu.dot_dimension_numbers<[1], [0], [0], [1], [0, 0, 1, 1], [], []>} : vector<4x4xf32>, vector<4x256xf32>, vector<4x256xf32> -> vector<4x256xf32>
    %c0_8 = arith.constant 0 : index
    %c0_9 = arith.constant 0 : index
    %16 = vector.load %arg4[%c0_8, %c0_9] : memref<4x4xf32, #tpu.memory_space<vmem>>, vector<4x4xf32>
    %cst_10 = arith.constant dense<0.000000e+00> : vector<4x256xf32>
    %17 = tpu.matmul %16, %13, %cst_10 {dimension_numbers = #tpu.dot_dimension_numbers<[1], [0], [0], [1], [0, 0, 1, 1], [], []>} : vector<4x4xf32>, vector<4x256xf32>, vector<4x256xf32> -> vector<4x256xf32>
    %18 = arith.addf %15, %17 : vector<4x256xf32>
    %c0_11 = arith.constant 0 : index
    %c0_12 = arith.constant 0 : index
    %19 = vector.load %arg5[%c0_11, %c0_12] : memref<4x1xf32, #tpu.memory_space<vmem>>, vector<4x1xf32>
    %20 = vector.broadcast %19 : vector<4x1xf32> to vector<4x256xf32>
    %21 = arith.addf %18, %20 : vector<4x256xf32>
    %22 = math.absf %21 : vector<4x256xf32>
    %cst_13 = arith.constant 0.000000e+00 : f32
    %23 = vector.broadcast %cst_13 : f32 to vector<4x256xf32>
    %24 = arith.subf %23, %22 : vector<4x256xf32>
    %25 = math.exp %24 : vector<4x256xf32>
    %cst_14 = arith.constant 1.000000e+00 : f32
    %26 = vector.broadcast %cst_14 : f32 to vector<4x256xf32>
    %27 = arith.subf %25, %26 : vector<4x256xf32>
    %cst_15 = arith.constant 0.000000e+00 : f32
    %28 = vector.broadcast %cst_15 : f32 to vector<4x256xf32>
    %29 = arith.cmpf ogt, %21, %28 : vector<4x256xf32>
    %30 = arith.select %29, %21, %27 : vector<4x256xi1>, vector<4x256xf32>
    %cst_16 = arith.constant 0.000000e+00 : f32
    %31 = vector.broadcast %cst_16 : f32 to vector<4x256xf32>
    %32 = arith.subf %31, %21 : vector<4x256xf32>
    %33 = arith.select %29, %27, %32 : vector<4x256xi1>, vector<4x256xf32>
    %c0_17 = arith.constant 0 : index
    %c0_18 = arith.constant 0 : index
    %34 = vector.load %arg6[%c0_17, %c0_18] : memref<4x4xf32, #tpu.memory_space<vmem>>, vector<4x4xf32>
    %cst_19 = arith.constant dense<0.000000e+00> : vector<4x256xf32>
    %35 = tpu.matmul %34, %30, %cst_19 {dimension_numbers = #tpu.dot_dimension_numbers<[1], [0], [0], [1], [0, 0, 1, 1], [], []>} : vector<4x4xf32>, vector<4x256xf32>, vector<4x256xf32> -> vector<4x256xf32>
    %c0_20 = arith.constant 0 : index
    %c0_21 = arith.constant 0 : index
    %36 = vector.load %arg7[%c0_20, %c0_21] : memref<4x4xf32, #tpu.memory_space<vmem>>, vector<4x4xf32>
    %cst_22 = arith.constant dense<0.000000e+00> : vector<4x256xf32>
    %37 = tpu.matmul %36, %33, %cst_22 {dimension_numbers = #tpu.dot_dimension_numbers<[1], [0], [0], [1], [0, 0, 1, 1], [], []>} : vector<4x4xf32>, vector<4x256xf32>, vector<4x256xf32> -> vector<4x256xf32>
    %38 = arith.addf %35, %37 : vector<4x256xf32>
    %c0_23 = arith.constant 0 : index
    %c0_24 = arith.constant 0 : index
    %39 = vector.load %arg8[%c0_23, %c0_24] : memref<4x1xf32, #tpu.memory_space<vmem>>, vector<4x1xf32>
    %40 = vector.broadcast %39 : vector<4x1xf32> to vector<4x256xf32>
    %41 = arith.addf %38, %40 : vector<4x256xf32>
    %c0_25 = arith.constant 0 : index
    %c0_26 = arith.constant 0 : index
    %42 = vector.load %arg9[%c0_25, %c0_26] : memref<4x4xf32, #tpu.memory_space<vmem>>, vector<4x4xf32>
    %cst_27 = arith.constant dense<0.000000e+00> : vector<4x256xf32>
    %43 = tpu.matmul %42, %30, %cst_27 {dimension_numbers = #tpu.dot_dimension_numbers<[1], [0], [0], [1], [0, 0, 1, 1], [], []>} : vector<4x4xf32>, vector<4x256xf32>, vector<4x256xf32> -> vector<4x256xf32>
    %c0_28 = arith.constant 0 : index
    %c0_29 = arith.constant 0 : index
    %44 = vector.load %arg10[%c0_28, %c0_29] : memref<4x4xf32, #tpu.memory_space<vmem>>, vector<4x4xf32>
    %cst_30 = arith.constant dense<0.000000e+00> : vector<4x256xf32>
    %45 = tpu.matmul %44, %33, %cst_30 {dimension_numbers = #tpu.dot_dimension_numbers<[1], [0], [0], [1], [0, 0, 1, 1], [], []>} : vector<4x4xf32>, vector<4x256xf32>, vector<4x256xf32> -> vector<4x256xf32>
    %46 = arith.addf %43, %45 : vector<4x256xf32>
    %c0_31 = arith.constant 0 : index
    %c0_32 = arith.constant 0 : index
    %47 = vector.load %arg11[%c0_31, %c0_32] : memref<4x1xf32, #tpu.memory_space<vmem>>, vector<4x1xf32>
    %48 = vector.broadcast %47 : vector<4x1xf32> to vector<4x256xf32>
    %49 = arith.addf %46, %48 : vector<4x256xf32>
    %c0_33 = arith.constant 0 : index
    %c0_34 = arith.constant 0 : index
    %c0_35 = arith.constant 0 : index
    %50 = vector.load %arg2[%c0_33, %c0_34, %c0_35] : memref<1x4x256xf32, #tpu.memory_space<vmem>>, vector<1x4x256xf32>
    %51 = vector.shape_cast %50 : vector<1x4x256xf32> to vector<4x256xf32>
    %52 = arith.negf %49 : vector<4x256xf32>
    %53 = math.exp %52 : vector<4x256xf32>
    %cst_36 = arith.constant 1.000000e+00 : f32
    %54 = vector.broadcast %cst_36 : f32 to vector<4x256xf32>
    %55 = arith.addf %54, %53 : vector<4x256xf32>
    %56 = arith.divf %54, %55 : vector<4x256xf32>
    %57 = arith.mulf %41, %56 : vector<4x256xf32>
    %58 = arith.addf %51, %57 : vector<4x256xf32>
    %c0_37 = arith.constant 0 : index
    %c0_38 = arith.constant 0 : index
    %c0_39 = arith.constant 0 : index
    %59 = vector.load %arg12[%c0_37, %c0_38, %c0_39] : memref<1x4x256xf32, #tpu.memory_space<vmem>>, vector<1x4x256xf32>
    %60 = vector.shape_cast %59 : vector<1x4x256xf32> to vector<4x256xf32>
    %61 = vector.shape_cast %58 : vector<4x256xf32> to vector<1x4x256xf32>
    tpu.vector_store %arg12[%c0_37, %c0_38, %c0_39], %61 {strides = array<i32>} : memref<1x4x256xf32, #tpu.memory_space<vmem>>, vector<1x4x256xf32>,
    return
  }
  func.func @transform_0(%arg0: i32, %arg1: i32) -> (i32, i32, i32) {
    %c0_i32 = arith.constant 0 : i32
    %c0_i32_0 = arith.constant 0 : i32
    return %arg0, %c0_i32, %arg1 : i32, i32, i32
  }
  func.func @transform_1(%arg0: i32, %arg1: i32) -> (i32, i32) {
    %c0_i32 = arith.constant 0 : i32
    %c0_i32_0 = arith.constant 0 : i32
    %c0_i32_1 = arith.constant 0 : i32
    return %c0_i32, %c0_i32_0 : i32, i32
  }
  func.func @transform_2(%arg0: i32, %arg1: i32) -> (i32, i32) {
    %c0_i32 = arith.constant 0 : i32
    %c0_i32_0 = arith.constant 0 : i32
    %c0_i32_1 = arith.constant 0 : i32
    return %c0_i32, %c0_i32_0 : i32, i32
  }
  func.func @transform_3(%arg0: i32, %arg1: i32) -> (i32, i32) {
    %c0_i32 = arith.constant 0 : i32
    %c0_i32_0 = arith.constant 0 : i32
    %c0_i32_1 = arith.constant 0 : i32
    return %c0_i32, %c0_i32_0 : i32, i32
  }
  func.func @transform_4(%arg0: i32, %arg1: i32) -> (i32, i32) {
    %c0_i32 = arith.constant 0 : i32
    %c0_i32_0 = arith.constant 0 : i32
    %c0_i32_1 = arith.constant 0 : i32
    return %c0_i32, %c0_i32_0 : i32, i32
  }
  func.func @transform_5(%arg0: i32, %arg1: i32) -> (i32, i32) {
    %c0_i32 = arith.constant 0 : i32
    %c0_i32_0 = arith.constant 0 : i32
    %c0_i32_1 = arith.constant 0 : i32
    return %c0_i32, %c0_i32_0 : i32, i32
  }
  func.func @transform_6(%arg0: i32, %arg1: i32) -> (i32, i32) {
    %c0_i32 = arith.constant 0 : i32
    %c0_i32_0 = arith.constant 0 : i32
    %c0_i32_1 = arith.constant 0 : i32
    return %c0_i32, %c0_i32_0 : i32, i32
  }
  func.func @transform_7(%arg0: i32, %arg1: i32) -> (i32, i32) {
    %c0_i32 = arith.constant 0 : i32
    %c0_i32_0 = arith.constant 0 : i32
    %c0_i32_1 = arith.constant 0 : i32
    return %c0_i32, %c0_i32_0 : i32, i32
  }
  func.func @transform_8(%arg0: i32, %arg1: i32) -> (i32, i32) {
    %c0_i32 = arith.constant 0 : i32
    %c0_i32_0 = arith.constant 0 : i32
    %c0_i32_1 = arith.constant 0 : i32
    return %c0_i32, %c0_i32_0 : i32, i32
  }
  func.func @transform_9(%arg0: i32, %arg1: i32) -> (i32, i32) {
    %c0_i32 = arith.constant 0 : i32
    %c0_i32_0 = arith.constant 0 : i32
    %c0_i32_1 = arith.constant 0 : i32
    return %c0_i32, %c0_i32_0 : i32, i32
  }
  func.func @transform_10(%arg0: i32, %arg1: i32) -> (i32, i32, i32) {
    %c0_i32 = arith.constant 0 : i32
    %c0_i32_0 = arith.constant 0 : i32
    return %arg0, %c0_i32, %arg1 : i32, i32, i32
  }
}

</mosaic_0001>

<llo_original>
// kernel: tpu_custom_call.1
$region0: #{tpu_custom_call.1}
  #allocation0 [shape = 'u32[]', space=smem, size = 0x4, offset = 0x4, fixed_abs, tag = 'smem constant byte address 0x4 - core index']
  #allocation1 [shape = 'u32[72,128]{1,0:T(1,128)}', space=vmem, size = 0x9000, scoped, tag = 'internal scratch']
  %s0 = inlined_call_operand.hbm [shape: f32[2,4,256], index: 0, kind: input, shape index: {}]
  %s1 = inlined_call_operand.vmem [shape: f32[4,4], index: 1, kind: input, shape index: {}]
  %s2 = inlined_call_operand.vmem [shape: f32[4,4], index: 2, kind: input, shape index: {}]
  %s3 = inlined_call_operand.vmem [shape: f32[4,1], index: 3, kind: input, shape index: {}]
  %s4 = inlined_call_operand.vmem [shape: f32[4,4], index: 4, kind: input, shape index: {}]
  %s5 = inlined_call_operand.hbm [shape: f32[4,4], index: 5, kind: input, shape index: {}]
  %s6 = inlined_call_operand.vmem [shape: f32[4,1], index: 6, kind: input, shape index: {}]
  %s7 = inlined_call_operand.vmem [shape: f32[4,4], index: 7, kind: input, shape index: {}]
  %s8 = inlined_call_operand.hbm [shape: f32[4,4], index: 8, kind: input, shape index: {}]
  %s9 = inlined_call_operand.vmem [shape: f32[4,1], index: 9, kind: input, shape index: {}]
  %s10 = inlined_call_operand.hbm [shape: f32[2,4,256], index: 10, kind: output, shape index: {}]
  %s11 = sld [smem:[#allocation0]]
  $region85: #{tpu_custom_call.1} parent=0
    _
  %s13 = ssub.s32 1, %s11
  %s14 = scalar_select 0, %s13, %s11
  $region1: #{tpu_custom_call.1} parent=0
    #allocation2 [shape = 'u8[8192]{0}', space=vmem, size = 0x2000, scoped, tag = 'input window, operand 0']
    #allocation3 [shape = 's32[2]{0}', space=sflag, size = 0x8, scoped, tag = 'scoped memory for tpu_custom_call.1']
    #allocation4 [shape = 's32[2]{0}', space=sflag, size = 0x8, scoped, tag = 'scoped memory for tpu_custom_call.1']
    #allocation5 [shape = 'u8[2048]{0}', space=vmem, size = 0x800, scoped, tag = 'input window, operand 5, single buffered']
    #allocation6 [shape = 's32[1]{0}', space=sflag, size = 0x4, scoped, tag = 'scoped memory for tpu_custom_call.1']
    #allocation7 [shape = 'u8[2048]{0}', space=vmem, size = 0x800, scoped, tag = 'input window, operand 8, single buffered']
    #allocation8 [shape = 'u8[8192]{0}', space=vmem, size = 0x2000, scoped, tag = 'output window, operand 0']
    %15 = vsyncpa [#allocation3], 0
    %s16 = scalar_lea.sflag [#allocation3], 1
    %17 = vsyncpa %s16, 0
    %18 = vsyncpa [#allocation6], 0
    %19 = vsyncpa [#allocation4], 0
    %s20 = scalar_lea.sflag [#allocation4], 1
    %21 = vsyncpa %s20, 0
    loop: start=0, step=1, limit=4
    $region2: #{tpu_custom_call.1} parent=1 // loop_pre_header
      _
    $region3: #{tpu_custom_call.1} parent=1 // loop_header
      %s23 = sphi 0, %s27
      %p24 = scmp.ge.s32.totalorder %s23, 4
      %s30 = sphi 0, %s42
      %s31 = sphi 0, %s38
      %s32 = sphi 0, %s30
      %s33 = sphi 0, %s31
      %s34 = sphi 0, %s32
      %s35 = sphi 0, %s33
      %s47 = sphi 0, %s49
      %s50 = sphi 0, %s47
      %s51 = sphi 0, %s50
      %s67 = sphi 0, %s51
      %s71 = sphi 0, %s71
      %s73 = sphi 0, %s71
      %s74 = sphi 0, %s73
      %s88 = sphi 0, %s74
      %s92 = sphi 0, %s92
      %s94 = sphi 0, %s92
      %s95 = sphi 0, %s94
      %s109 = sphi 0, %s95
      %s113 = sphi 0, %s113
      %s115 = sphi 0, %s113
      %s116 = sphi 0, %s115
      %s130 = sphi 0, %s116
      %s134 = sphi 0, %s134
      %s136 = sphi 0, %s134
      %s137 = sphi 0, %s136
      %s151 = sphi 0, %s137
      %s155 = sphi 0, %s155
      %s157 = sphi 0, %s155
      %s158 = sphi 0, %s157
      %s172 = sphi 0, %s158
      %s176 = sphi 0, %s176
      %s178 = sphi 0, %s176
      %s179 = sphi 0, %s178
      %s193 = sphi 0, %s179
      %s197 = sphi 0, %s197
      %s199 = sphi 0, %s197
      %s200 = sphi 0, %s199
      %s214 = sphi 0, %s200
      %s218 = sphi 0, %s218
      %s220 = sphi 0, %s218
      %s221 = sphi 0, %s220
      %s235 = sphi 0, %s221
      %s239 = sphi 0, %s239
      %s241 = sphi 0, %s239
      %s242 = sphi 0, %s241
      %s256 = sphi 0, %s242
      %s264 = sphi 0, %s266
      %s267 = sphi 0, %s264
      %s268 = sphi 0, %s267
      %s284 = sphi 0, %s268
    $region4: #{tpu_custom_call.1} parent=1 // loop_header_branch
      %26 = sbr.rel (%p24) target = $region8
    $region5: #{tpu_custom_call.1} parent=1 // loop_body
      %s28 = ssub.s32 %s23, 1
      %s29 = ssub.s32 %s23, 2
      %s36 = sadd.s32 1, %s31
      %p37 = scmp.ge.s32.totalorder %s36, 1
      %s38 = scalar_select %p37, 0, %s36
      %s39 = sadd.s32 1, %s30
      %s40 = scalar_select %p37, %s39, %s30
      %p41 = scmp.ge.s32.totalorder %s40, 2
      %s42 = scalar_select %p41, 0, %s40
      %s43 = ssub.s32 %s30, %s42
      %s44 = ssub.s32 %s31, %s38
      %s45 = sor.u32 %s43, %s44
      %p46 = scmp.eq.s32.totalorder %s45, 0
      %s48 = sadd.s32 %s47, 1
      %s49 = scalar_select %p46, %s47, %s48
      %p52 = pneg %p46
      %p53 = scmp.eq.s32.totalorder %s23, 1
      %p54 = por %p52, %p53
      %p55 = scmp.ne.s32.totalorder %s47, %s50
      %p56 = scmp.eq.s32.totalorder %s23, 0
      %p57 = por %p55, %p56
      %p58 = scmp.ne.s32.totalorder %s47, %s50
      %p59 = scmp.eq.s32.totalorder %s28, 1
      %p60 = por %p58, %p59
      %p61 = scmp.ne.s32.totalorder %s50, %s51
      %p62 = scmp.eq.s32.totalorder %s28, 0
      %p63 = por %p61, %p62
      %p64 = scmp.ne.s32.totalorder %s50, %s51
      %p65 = scmp.eq.s32.totalorder %s29, 1
      %p66 = por %p64, %p65
      %p68 = scmp.ne.s32.totalorder %s51, %s67
      %p69 = scmp.eq.s32.totalorder %s29, 0
      %p70 = por %p68, %p69
      %s72 = sadd.s32 %s71, 1
      %p75 = scmp.eq.s32.totalorder %s23, 1
      %p76 = scmp.ne.s32.totalorder %s71, %s73
      %p77 = scmp.eq.s32.totalorder %s23, 0
      %p78 = por %p76, %p77
      %p79 = scmp.ne.s32.totalorder %s71, %s73
      %p80 = scmp.eq.s32.totalorder %s28, 1
      %p81 = por %p79, %p80
      %p82 = scmp.ne.s32.totalorder %s73, %s74
      %p83 = scmp.eq.s32.totalorder %s28, 0
      %p84 = por %p82, %p83
      %p85 = scmp.ne.s32.totalorder %s73, %s74
      %p86 = scmp.eq.s32.totalorder %s29, 1
      %p87 = por %p85, %p86
      %p89 = scmp.ne.s32.totalorder %s74, %s88
      %p90 = scmp.eq.s32.totalorder %s29, 0
      %p91 = por %p89, %p90
      %s93 = sadd.s32 %s92, 1
      %p96 = scmp.eq.s32.totalorder %s23, 1
      %p97 = scmp.ne.s32.totalorder %s92, %s94
      %p98 = scmp.eq.s32.totalorder %s23, 0
      %p99 = por %p97, %p98
      %p100 = scmp.ne.s32.totalorder %s92, %s94
      %p101 = scmp.eq.s32.totalorder %s28, 1
      %p102 = por %p100, %p101
      %p103 = scmp.ne.s32.totalorder %s94, %s95
      %p104 = scmp.eq.s32.totalorder %s28, 0
      %p105 = por %p103, %p104
      %p106 = scmp.ne.s32.totalorder %s94, %s95
      %p107 = scmp.eq.s32.totalorder %s29, 1
      %p108 = por %p106, %p107
      %p110 = scmp.ne.s32.totalorder %s95, %s109
      %p111 = scmp.eq.s32.totalorder %s29, 0
      %p112 = por %p110, %p111
      %s114 = sadd.s32 %s113, 1
      %p117 = scmp.eq.s32.totalorder %s23, 1
      %p118 = scmp.ne.s32.totalorder %s113, %s115
      %p119 = scmp.eq.s32.totalorder %s23, 0
      %p120 = por %p118, %p119
      %p121 = scmp.ne.s32.totalorder %s113, %s115
      %p122 = scmp.eq.s32.totalorder %s28, 1
      %p123 = por %p121, %p122
      %p124 = scmp.ne.s32.totalorder %s115, %s116
      %p125 = scmp.eq.s32.totalorder %s28, 0
      %p126 = por %p124, %p125
      %p127 = scmp.ne.s32.totalorder %s115, %s116
      %p128 = scmp.eq.s32.totalorder %s29, 1
      %p129 = por %p127, %p128
      %p131 = scmp.ne.s32.totalorder %s116, %s130
      %p132 = scmp.eq.s32.totalorder %s29, 0
      %p133 = por %p131, %p132
      %s135 = sadd.s32 %s134, 1
      %p138 = scmp.eq.s32.totalorder %s23, 1
      %p139 = scmp.ne.s32.totalorder %s134, %s136
      %p140 = scmp.eq.s32.totalorder %s23, 0
      %p141 = por %p139, %p140
      %p142 = scmp.ne.s32.totalorder %s134, %s136
      %p143 = scmp.eq.s32.totalorder %s28, 1
      %p144 = por %p142, %p143
      %p145 = scmp.ne.s32.totalorder %s136, %s137
      %p146 = scmp.eq.s32.totalorder %s28, 0
      %p147 = por %p145, %p146
      %p148 = scmp.ne.s32.totalorder %s136, %s137
      %p149 = scmp.eq.s32.totalorder %s29, 1
      %p150 = por %p148, %p149
      %p152 = scmp.ne.s32.totalorder %s137, %s151
      %p153 = scmp.eq.s32.totalorder %s29, 0
      %p154 = por %p152, %p153
      %s156 = sadd.s32 %s155, 1
      %p159 = scmp.eq.s32.totalorder %s23, 1
      %p160 = scmp.ne.s32.totalorder %s155, %s157
      %p161 = scmp.eq.s32.totalorder %s23, 0
      %p162 = por %p160, %p161
      %p163 = scmp.ne.s32.totalorder %s155, %s157
      %p164 = scmp.eq.s32.totalorder %s28, 1
      %p165 = por %p163, %p164
      %p166 = scmp.ne.s32.totalorder %s157, %s158
      %p167 = scmp.eq.s32.totalorder %s28, 0
      %p168 = por %p166, %p167
      %p169 = scmp.ne.s32.totalorder %s157, %s158
      %p170 = scmp.eq.s32.totalorder %s29, 1
      %p171 = por %p169, %p170
      %p173 = scmp.ne.s32.totalorder %s158, %s172
      %p174 = scmp.eq.s32.totalorder %s29, 0
      %p175 = por %p173, %p174
      %s177 = sadd.s32 %s176, 1
      %p180 = scmp.eq.s32.totalorder %s23, 1
      %p181 = scmp.ne.s32.totalorder %s176, %s178
      %p182 = scmp.eq.s32.totalorder %s23, 0
      %p183 = por %p181, %p182
      %p184 = scmp.ne.s32.totalorder %s176, %s178
      %p185 = scmp.eq.s32.totalorder %s28, 1
      %p186 = por %p184, %p185
      %p187 = scmp.ne.s32.totalorder %s178, %s179
      %p188 = scmp.eq.s32.totalorder %s28, 0
      %p189 = por %p187, %p188
      %p190 = scmp.ne.s32.totalorder %s178, %s179
      %p191 = scmp.eq.s32.totalorder %s29, 1
      %p192 = por %p190, %p191
      %p194 = scmp.ne.s32.totalorder %s179, %s193
      %p195 = scmp.eq.s32.totalorder %s29, 0
      %p196 = por %p194, %p195
      %s198 = sadd.s32 %s197, 1
      %p201 = scmp.eq.s32.totalorder %s23, 1
      %p202 = scmp.ne.s32.totalorder %s197, %s199
      %p203 = scmp.eq.s32.totalorder %s23, 0
      %p204 = por %p202, %p203
      %p205 = scmp.ne.s32.totalorder %s197, %s199
      %p206 = scmp.eq.s32.totalorder %s28, 1
      %p207 = por %p205, %p206
      %p208 = scmp.ne.s32.totalorder %s199, %s200
      %p209 = scmp.eq.s32.totalorder %s28, 0
      %p210 = por %p208, %p209
      %p211 = scmp.ne.s32.totalorder %s199, %s200
      %p212 = scmp.eq.s32.totalorder %s29, 1
      %p213 = por %p211, %p212
      %p215 = scmp.ne.s32.totalorder %s200, %s214
      %p216 = scmp.eq.s32.totalorder %s29, 0
      %p217 = por %p215, %p216
      %s219 = sadd.s32 %s218, 1
      %p222 = scmp.eq.s32.totalorder %s23, 1
      %p223 = scmp.ne.s32.totalorder %s218, %s220
      %p224 = scmp.eq.s32.totalorder %s23, 0
      %p225 = por %p223, %p224
      %p226 = scmp.ne.s32.totalorder %s218, %s220
      %p227 = scmp.eq.s32.totalorder %s28, 1
      %p228 = por %p226, %p227
      %p229 = scmp.ne.s32.totalorder %s220, %s221
      %p230 = scmp.eq.s32.totalorder %s28, 0
      %p231 = por %p229, %p230
      %p232 = scmp.ne.s32.totalorder %s220, %s221
      %p233 = scmp.eq.s32.totalorder %s29, 1
      %p234 = por %p232, %p233
      %p236 = scmp.ne.s32.totalorder %s221, %s235
      %p237 = scmp.eq.s32.totalorder %s29, 0
      %p238 = por %p236, %p237
      %s240 = sadd.s32 %s239, 1
      %p243 = scmp.eq.s32.totalorder %s23, 1
      %p244 = scmp.ne.s32.totalorder %s239, %s241
      %p245 = scmp.eq.s32.totalorder %s23, 0
      %p246 = por %p244, %p245
      %p247 = scmp.ne.s32.totalorder %s239, %s241
      %p248 = scmp.eq.s32.totalorder %s28, 1
      %p249 = por %p247, %p248
      %p250 = scmp.ne.s32.totalorder %s241, %s242
      %p251 = scmp.eq.s32.totalorder %s28, 0
      %p252 = por %p250, %p251
      %p253 = scmp.ne.s32.totalorder %s241, %s242
      %p254 = scmp.eq.s32.totalorder %s29, 1
      %p255 = por %p253, %p254
      %p257 = scmp.ne.s32.totalorder %s242, %s256
      %p258 = scmp.eq.s32.totalorder %s29, 0
      %p259 = por %p257, %p258
      %s260 = ssub.s32 %s30, %s42
      %s261 = ssub.s32 %s31, %s38
      %s262 = sor.u32 %s260, %s261
      %p263 = scmp.eq.s32.totalorder %s262, 0
      %s265 = sadd.s32 %s264, 1
      %s266 = scalar_select %p263, %s264, %s265
      %p269 = pneg %p263
      %p270 = scmp.eq.s32.totalorder %s23, 1
      %p271 = por %p269, %p270
      %p272 = scmp.ne.s32.totalorder %s264, %s267
      %p273 = scmp.eq.s32.totalorder %s23, 0
      %p274 = por %p272, %p273
      %p275 = scmp.ne.s32.totalorder %s264, %s267
      %p276 = scmp.eq.s32.totalorder %s28, 1
      %p277 = por %p275, %p276
      %p278 = scmp.ne.s32.totalorder %s267, %s268
      %p279 = scmp.eq.s32.totalorder %s28, 0
      %p280 = por %p278, %p279
      %p281 = scmp.ne.s32.totalorder %s267, %s268
      %p282 = scmp.eq.s32.totalorder %s29, 1
      %p283 = por %p281, %p282
      %p285 = scmp.ne.s32.totalorder %s268, %s284
      %p286 = scmp.eq.s32.totalorder %s29, 0
      %p287 = por %p285, %p286
      %p288 = scmp.le.s32.totalorder 1, %s23
      %p289 = scmp.lt.s32.totalorder %s23, 3
      %p290 = pnand %p288, %p289
      %p291 = pneg %p290
      // Predicated region
      $region9: #{tpu_custom_call.1} parent=5 // pred_check
        _
      $region10: #{tpu_custom_call.1} parent=5 // pred_check_branch
        %293 = sbr.rel (%p290) target = $region12
      $region11: #{tpu_custom_call.1} parent=5 // pred_region
        %s294 = ssub.s32 %s23, 1
        // Predicated region
        $region13: #{tpu_custom_call.1} parent=11 // pred_check
          %p295 = pneg %p84
        $region14: #{tpu_custom_call.1} parent=11 // pred_check_branch
          %297 = sbr.rel (%p295) target = $region16
        $region15: #{tpu_custom_call.1} parent=11 // pred_region
          _
        $region16: #{tpu_custom_call.1} parent=11 // pred_fallthru
          _
        // Predicated region
        $region17: #{tpu_custom_call.1} parent=11 // pred_check
          %p298 = pneg %p105
        $region18: #{tpu_custom_call.1} parent=11 // pred_check_branch
          %300 = sbr.rel (%p298) target = $region20
        $region19: #{tpu_custom_call.1} parent=11 // pred_region
          _
        $region20: #{tpu_custom_call.1} parent=11 // pred_fallthru
          _
        // Predicated region
        $region21: #{tpu_custom_call.1} parent=11 // pred_check
          %p301 = pneg %p126
        $region22: #{tpu_custom_call.1} parent=11 // pred_check_branch
          %303 = sbr.rel (%p301) target = $region24
        $region23: #{tpu_custom_call.1} parent=11 // pred_region
          _
        $region24: #{tpu_custom_call.1} parent=11 // pred_fallthru
          _
        // Predicated region
        $region25: #{tpu_custom_call.1} parent=11 // pred_check
          %p304 = pneg %p147
        $region26: #{tpu_custom_call.1} parent=11 // pred_check_branch
          %306 = sbr.rel (%p304) target = $region28
        $region27: #{tpu_custom_call.1} parent=11 // pred_region
          _
        $region28: #{tpu_custom_call.1} parent=11 // pred_fallthru
          _
        // Predicated region
        $region29: #{tpu_custom_call.1} parent=11 // pred_check
          %p307 = pneg %p168
        $region30: #{tpu_custom_call.1} parent=11 // pred_check_branch
          %309 = sbr.rel (%p307) target = $region32
        $region31: #{tpu_custom_call.1} parent=11 // pred_region
          %311 = vsyncadd [#allocation6], 0
          %s313 = sshll.u32 %s5, 4
          %s314 = int_to_ptr.hbm [resolvable:$true] %s313
          %s315 = sshll.u32 [#allocation5], 4
          %s316 = int_to_ptr.vmem [resolvable:$true] %s315
          %318 = dma.hbm_to_vmem [thread:$0]  %s314, 64, %s316, [#allocation6]
        $region32: #{tpu_custom_call.1} parent=11 // pred_fallthru
          _
        // Predicated region
        $region33: #{tpu_custom_call.1} parent=11 // pred_check
          %p319 = pneg %p189
        $region34: #{tpu_custom_call.1} parent=11 // pred_check_branch
          %321 = sbr.rel (%p319) target = $region36
        $region35: #{tpu_custom_call.1} parent=11 // pred_region
          _
        $region36: #{tpu_custom_call.1} parent=11 // pred_fallthru
          _
        // Predicated region
        $region37: #{tpu_custom_call.1} parent=11 // pred_check
          %p322 = pneg %p210
        $region38: #{tpu_custom_call.1} parent=11 // pred_check_branch
          %324 = sbr.rel (%p322) target = $region40
        $region39: #{tpu_custom_call.1} parent=11 // pred_region
          _
        $region40: #{tpu_custom_call.1} parent=11 // pred_fallthru
          _
        // Predicated region
        $region41: #{tpu_custom_call.1} parent=11 // pred_check
          %p325 = pneg %p231
        $region42: #{tpu_custom_call.1} parent=11 // pred_check_branch
          %327 = sbr.rel (%p325) target = $region44
        $region43: #{tpu_custom_call.1} parent=11 // pred_region
          %329 = vsyncadd [#allocation6], 0
          %s331 = sshll.u32 %s8, 4
          %s332 = int_to_ptr.hbm [resolvable:$true] %s331
          %s333 = sshll.u32 [#allocation7], 4
          %s334 = int_to_ptr.vmem [resolvable:$true] %s333
          %336 = dma.hbm_to_vmem [thread:$0]  %s332, 64, %s334, [#allocation6]
        $region44: #{tpu_custom_call.1} parent=11 // pred_fallthru
          _
        // Predicated region
        $region45: #{tpu_custom_call.1} parent=11 // pred_check
          %p337 = pneg %p252
        $region46: #{tpu_custom_call.1} parent=11 // pred_check_branch
          %339 = sbr.rel (%p337) target = $region48
        $region47: #{tpu_custom_call.1} parent=11 // pred_region
          _
        $region48: #{tpu_custom_call.1} parent=11 // pred_fallthru
          _
      $region12: #{tpu_custom_call.1} parent=5 // pred_fallthru
        _
      %p340 = scmp.lt.s32.totalorder %s23, 2
      // Predicated region
      $region49: #{tpu_custom_call.1} parent=5 // pred_check
        %p341 = pneg %p340
      $region50: #{tpu_custom_call.1} parent=5 // pred_check_branch
        %343 = sbr.rel (%p341) target = $region52
      $region51: #{tpu_custom_call.1} parent=5 // pred_region
        // Predicated region
        $region53: #{tpu_custom_call.1} parent=51 // pred_check
          %p344 = pneg %p57
        $region54: #{tpu_custom_call.1} parent=51 // pred_check_branch
          %346 = sbr.rel (%p344) target = $region56
        $region55: #{tpu_custom_call.1} parent=51 // pred_region
          %s347 = sand.u32 %s47, 1
          %s348 = scalar_lea.sflag [#allocation3], %s347
          %s349 = sand.u32 %s47, 1
          %s350 = smul.addr %s349, 8
          %s351 = scalar_lea.vmem [#allocation2], %s350
          %s352 = smul.u32 2, %s31
          %354 = vsyncadd %s348, 0
          %s355 = smul.addr %s30, 2
          %s356 = sadd.s32 %s352, %s355
          %s357 = smul.addr %s356, 4
          %s358 = scalar_lea.hbm %s0, %s357
          %s360 = sshll.u32 %s358, 4
          %s361 = int_to_ptr.hbm [resolvable:$true] %s360
          %s362 = sshll.u32 %s351, 4
          %s363 = int_to_ptr.vmem [resolvable:$true] %s362
          %365 = dma.hbm_to_vmem [thread:$0]  %s361, 128, %s363, %s348
        $region56: #{tpu_custom_call.1} parent=51 // pred_fallthru
          _
      $region52: #{tpu_custom_call.1} parent=5 // pred_fallthru
        _
      %p366 = scmp.le.s32.totalorder 1, %s23
      %p367 = scmp.lt.s32.totalorder %s23, 3
      %p368 = pnand %p366, %p367
      %p369 = pneg %p368
      // Predicated region
      $region57: #{tpu_custom_call.1} parent=5 // pred_check
        _
      $region58: #{tpu_custom_call.1} parent=5 // pred_check_branch
        %371 = sbr.rel (%p368) target = $region60
      $region59: #{tpu_custom_call.1} parent=5 // pred_region
        %s372 = ssub.s32 %s23, 1
        %s373 = sand.u32 %s50, 1
        %s374 = scalar_lea.sflag [#allocation3], %s373
        %s375 = sand.u32 %s50, 1
        %s376 = smul.addr %s375, 8
        %s377 = scalar_lea.vmem [#allocation2], %s376
        // Predicated region
        $region61: #{tpu_custom_call.1} parent=59 // pred_check
          %p378 = pneg %p63
        $region62: #{tpu_custom_call.1} parent=59 // pred_check_branch
          %380 = sbr.rel (%p378) target = $region64
        $region63: #{tpu_custom_call.1} parent=59 // pred_region
          %382 = dma.done %s374, 128
        $region64: #{tpu_custom_call.1} parent=59 // pred_fallthru
          _
        // Predicated region
        $region65: #{tpu_custom_call.1} parent=59 // pred_check
          %p383 = pneg %p168
        $region66: #{tpu_custom_call.1} parent=59 // pred_check_branch
          %385 = sbr.rel (%p383) target = $region68
        $region67: #{tpu_custom_call.1} parent=59 // pred_region
          %387 = dma.done [#allocation6], 64
        $region68: #{tpu_custom_call.1} parent=59 // pred_fallthru
          _
        // Predicated region
        $region69: #{tpu_custom_call.1} parent=59 // pred_check
          %p388 = pneg %p231
        $region70: #{tpu_custom_call.1} parent=59 // pred_check_branch
          %390 = sbr.rel (%p388) target = $region72
        $region71: #{tpu_custom_call.1} parent=59 // pred_region
          %392 = dma.done [#allocation6], 64
        $region72: #{tpu_custom_call.1} parent=59 // pred_fallthru
          _
        %s393 = sand.u32 %s50, 1
        %s394 = scalar_lea.sflag [#allocation3], %s393
        %s395 = sand.u32 %s50, 1
        %s396 = smul.addr %s395, 8
        %s397 = scalar_lea.vmem [#allocation2], %s396
        %p398 = pneg %p63
        %p399 = pneg %p60
        %p400 = pneg %p84
        %p401 = pneg %p81
        %p402 = pneg %p105
        %p403 = pneg %p102
        %p404 = pneg %p126
        %p405 = pneg %p123
        %p406 = pneg %p147
        %p407 = pneg %p144
        %p408 = pneg %p168
        %p409 = pneg %p165
        %p410 = pneg %p189
        %p411 = pneg %p186
        %p412 = pneg %p210
        %p413 = pneg %p207
        %p414 = pneg %p231
        %p415 = pneg %p228
        %p416 = pneg %p252
        %p417 = pneg %p249
        %p418 = pneg %p280
        %p419 = pneg %p277
        %s420 = sand.u32 %s267, 1
        %s421 = scalar_lea.sflag [#allocation4], %s420
        %s422 = sand.u32 %s267, 1
        %s423 = smul.addr %s422, 8
        %s424 = scalar_lea.vmem [#allocation8], %s423
        %s425 = smul.u32 2, %s33
        %s426 = smul.u32 2, %s33
        %v427 = vld [vmem:[%s377] sm:$0xff]
        %v428 = vand.u32 2147483647, %v427
        %v429 = vsub.f32 0.0, %v428
        %v430 = vmul.f32 %v429, 1.442695
        %v431 = vpow.pop %v430
        %v432 = vsub.f32 %v431, 1.0
        %vm433 = vcmp.gt.f32.partialorder %v427, 0.0
        %v434 = vsel %vm433, %v427, %v432
        %v435 = vsub.f32 0.0, %v427
        %v436 = vsel %vm433, %v432, %v435
        %v437 = vld [vmem:[%s1] sm:$0xf]
        %v438 = vld [vmem:[%s2] sm:$0xf]
        %440 = vst [vmem:[#allocation1] ss:$2 sm:$0xff] %v436
        %v441 = vld.sshfl [vmem:[#allocation1] sm:$0xff pattern:$0x75316420]
        %v442 = vld.sshfl [vmem:[#allocation1 + $0x8] sm:$0xff pattern:$0x75316420]
        %vm443 = vcmask 31744
        %v445 = vsel %vm443, %v438, 0
        %vm447 = vcmask 1043456
        %v448 = vsel %vm447, %v441, 0
        %v450 = vsel %vm447, %v442, 0
        %452 = vmatpush.msra.mxu0 0.0
        %453 = vmatpush.msra.mxu0 0.0
        %454 = vmatpush.msra.mxu0 0.0
        %455 = vmatpush.msra.mxu0 0.0
        %456 = vmatpush.msra.mxu0 0.0
        %457 = vmatpush.msra.mxu0 0.0
        %458 = vmatpush.msra.mxu0 0.0
        %459 = vmatpush.msra.mxu0 0.0
        %460 = vmatpush.msra.mxu0 0.0
        %461 = vmatpush.msra.mxu0 0.0
        %462 = vmatpush.msra.mxu0 0.0
        %463 = vmatpush.msra.mxu0 0.0
        %464 = vmatpush.msra.mxu0 0.0
        %465 = vmatpush.msra.mxu0 0.0
        %466 = vmatpush.msra.mxu0 0.0
        %467 = vmatpush.msra.mxu0 %v448
        %468 = vmatmul.f32.gmra.mxu0 %v445
        %v469 = vpop.f32.mrf.mxu0
        %v470 = vadd.f32 0.0, %v469
        %471 = vdwg.mxu0
        %472 = vmatpush.msra.mxu0 0.0
        %473 = vmatpush.msra.mxu0 0.0
        %474 = vmatpush.msra.mxu0 0.0
        %475 = vmatpush.msra.mxu0 0.0
        %476 = vmatpush.msra.mxu0 0.0
        %477 = vmatpush.msra.mxu0 0.0
        %478 = vmatpush.msra.mxu0 0.0
        %479 = vmatpush.msra.mxu0 0.0
        %480 = vmatpush.msra.mxu0 0.0
        %481 = vmatpush.msra.mxu0 0.0
        %482 = vmatpush.msra.mxu0 0.0
        %483 = vmatpush.msra.mxu0 0.0
        %484 = vmatpush.msra.mxu0 0.0
        %485 = vmatpush.msra.mxu0 0.0
        %486 = vmatpush.msra.mxu0 0.0
        %487 = vmatpush.msra.mxu0 %v450
        %488 = vmatmul.f32.gmra.mxu0 %v445
        %v489 = vpop.f32.mrf.mxu0
        %v490 = vadd.f32 0.0, %v489
        %491 = vdwg.mxu0
        %493 = vst [vmem:[#allocation1] ss:$2 sm:$0xff] %v434
        %v494 = vld.sshfl [vmem:[#allocation1] sm:$0xff pattern:$0x75316420]
        %v495 = vld.sshfl [vmem:[#allocation1 + $0x8] sm:$0xff pattern:$0x75316420]
        %v497 = vsel %vm443, %v437, 0
        %v499 = vsel %vm447, %v494, 0
        %v501 = vsel %vm447, %v495, 0
        %503 = vmatpush.msra.mxu0 0.0
        %504 = vmatpush.msra.mxu0 0.0
        %505 = vmatpush.msra.mxu0 0.0
        %506 = vmatpush.msra.mxu0 0.0
        %507 = vmatpush.msra.mxu0 0.0
        %508 = vmatpush.msra.mxu0 0.0
        %509 = vmatpush.msra.mxu0 0.0
        %510 = vmatpush.msra.mxu0 0.0
        %511 = vmatpush.msra.mxu0 0.0
        %512 = vmatpush.msra.mxu0 0.0
        %513 = vmatpush.msra.mxu0 0.0
        %514 = vmatpush.msra.mxu0 0.0
        %515 = vmatpush.msra.mxu0 0.0
        %516 = vmatpush.msra.mxu0 0.0
        %517 = vmatpush.msra.mxu0 0.0
        %518 = vmatpush.msra.mxu0 %v499
        %519 = vmatmul.f32.gmra.mxu0 %v497
        %v520 = vpop.f32.mrf.mxu0
        %v521 = vadd.f32 %v470, %v520
        %522 = vdwg.mxu0
        %523 = vmatpush.msra.mxu0 0.0
        %524 = vmatpush.msra.mxu0 0.0
        %525 = vmatpush.msra.mxu0 0.0
        %526 = vmatpush.msra.mxu0 0.0
        %527 = vmatpush.msra.mxu0 0.0
        %528 = vmatpush.msra.mxu0 0.0
        %529 = vmatpush.msra.mxu0 0.0
        %530 = vmatpush.msra.mxu0 0.0
        %531 = vmatpush.msra.mxu0 0.0
        %532 = vmatpush.msra.mxu0 0.0
        %533 = vmatpush.msra.mxu0 0.0
        %534 = vmatpush.msra.mxu0 0.0
        %535 = vmatpush.msra.mxu0 0.0
        %536 = vmatpush.msra.mxu0 0.0
        %537 = vmatpush.msra.mxu0 0.0
        %538 = vmatpush.msra.mxu0 %v501
        %539 = vmatmul.f32.gmra.mxu0 %v497
        %v540 = vpop.f32.mrf.mxu0
        %v541 = vadd.f32 %v490, %v540
        %542 = vdwg.mxu0
        %v543 = vld [vmem:[%s3] sm:$0xf]
        %545 = vset.pattern.permute.xlu0 0
        %546 = vperm.xlu0 %545, %v543
        %v547 = vpop.permute.xlu0 %546
        %v549 = vadd.f32 %v521, %v547
        %v550 = vadd.f32 %v541, %v547
        %v551 = vand.u32 2147483647, %v549
        %v552 = vand.u32 2147483647, %v550
        %v553 = vsub.f32 0.0, %v551
        %v554 = vsub.f32 0.0, %v552
        %v555 = vmul.f32 %v553, 1.442695
        %v556 = vpow.pop %v555
        %v557 = vmul.f32 %v554, 1.442695
        %v558 = vpow.pop %v557
        %v559 = vsub.f32 %v556, 1.0
        %v560 = vsub.f32 %v558, 1.0
        %vm561 = vcmp.gt.f32.partialorder %v549, 0.0
        %vm562 = vcmp.gt.f32.partialorder %v550, 0.0
        %v563 = vsel %vm561, %v549, %v559
        %v564 = vsel %vm562, %v550, %v560
        %v565 = vsub.f32 0.0, %v549
        %v566 = vsub.f32 0.0, %v550
        %v567 = vsel %vm561, %v559, %v565
        %v568 = vsel %vm562, %v560, %v566
        %v569 = vld [vmem:[%s4] sm:$0xf]
        %v570 = vld [vmem:[#allocation5] sm:$0xf]
        %v572 = vsel %vm443, %v570, 0
        %v575 = vsel %vm447, %v567, 0
        %v578 = vsel %vm447, %v568, 0
        %580 = vmatpush.msra.mxu0 0.0
        %581 = vmatpush.msra.mxu0 0.0
        %582 = vmatpush.msra.mxu0 0.0
        %583 = vmatpush.msra.mxu0 0.0
        %584 = vmatpush.msra.mxu0 0.0
        %585 = vmatpush.msra.mxu0 0.0
        %586 = vmatpush.msra.mxu0 0.0
        %587 = vmatpush.msra.mxu0 0.0
        %588 = vmatpush.msra.mxu0 0.0
        %589 = vmatpush.msra.mxu0 0.0
        %590 = vmatpush.msra.mxu0 0.0
        %591 = vmatpush.msra.mxu0 0.0
        %592 = vmatpush.msra.mxu0 0.0
        %593 = vmatpush.msra.mxu0 0.0
        %594 = vmatpush.msra.mxu0 0.0
        %595 = vmatpush.msra.mxu0 %v575
        %596 = vmatmul.f32.gmra.mxu0 %v572
        %v597 = vpop.f32.mrf.mxu0
        %v598 = vadd.f32 0.0, %v597
        %599 = vdwg.mxu0
        %600 = vmatpush.msra.mxu0 0.0
        %601 = vmatpush.msra.mxu0 0.0
        %602 = vmatpush.msra.mxu0 0.0
        %603 = vmatpush.msra.mxu0 0.0
        %604 = vmatpush.msra.mxu0 0.0
        %605 = vmatpush.msra.mxu0 0.0
        %606 = vmatpush.msra.mxu0 0.0
        %607 = vmatpush.msra.mxu0 0.0
        %608 = vmatpush.msra.mxu0 0.0
        %609 = vmatpush.msra.mxu0 0.0
        %610 = vmatpush.msra.mxu0 0.0
        %611 = vmatpush.msra.mxu0 0.0
        %612 = vmatpush.msra.mxu0 0.0
        %613 = vmatpush.msra.mxu0 0.0
        %614 = vmatpush.msra.mxu0 0.0
        %615 = vmatpush.msra.mxu0 %v578
        %616 = vmatmul.f32.gmra.mxu0 %v572
        %v617 = vpop.f32.mrf.mxu0
        %v618 = vadd.f32 0.0, %v617
        %619 = vdwg.mxu0
        %v621 = vsel %vm443, %v569, 0
        %v624 = vsel %vm447, %v563, 0
        %v627 = vsel %vm447, %v564, 0
        %629 = vmatpush.msra.mxu0 0.0
        %630 = vmatpush.msra.mxu0 0.0
        %631 = vmatpush.msra.mxu0 0.0
        %632 = vmatpush.msra.mxu0 0.0
        %633 = vmatpush.msra.mxu0 0.0
        %634 = vmatpush.msra.mxu0 0.0
        %635 = vmatpush.msra.mxu0 0.0
        %636 = vmatpush.msra.mxu0 0.0
        %637 = vmatpush.msra.mxu0 0.0
        %638 = vmatpush.msra.mxu0 0.0
        %639 = vmatpush.msra.mxu0 0.0
        %640 = vmatpush.msra.mxu0 0.0
        %641 = vmatpush.msra.mxu0 0.0
        %642 = vmatpush.msra.mxu0 0.0
        %643 = vmatpush.msra.mxu0 0.0
        %644 = vmatpush.msra.mxu0 %v624
        %645 = vmatmul.f32.gmra.mxu0 %v621
        %v646 = vpop.f32.mrf.mxu0
        %v647 = vadd.f32 %v598, %v646
        %648 = vdwg.mxu0
        %649 = vmatpush.msra.mxu0 0.0
        %650 = vmatpush.msra.mxu0 0.0
        %651 = vmatpush.msra.mxu0 0.0
        %652 = vmatpush.msra.mxu0 0.0
        %653 = vmatpush.msra.mxu0 0.0
        %654 = vmatpush.msra.mxu0 0.0
        %655 = vmatpush.msra.mxu0 0.0
        %656 = vmatpush.msra.mxu0 0.0
        %657 = vmatpush.msra.mxu0 0.0
        %658 = vmatpush.msra.mxu0 0.0
        %659 = vmatpush.msra.mxu0 0.0
        %660 = vmatpush.msra.mxu0 0.0
        %661 = vmatpush.msra.mxu0 0.0
        %662 = vmatpush.msra.mxu0 0.0
        %663 = vmatpush.msra.mxu0 0.0
        %664 = vmatpush.msra.mxu0 %v627
        %665 = vmatmul.f32.gmra.mxu0 %v621
        %v666 = vpop.f32.mrf.mxu0
        %v667 = vadd.f32 %v618, %v666
        %668 = vdwg.mxu0
        %v669 = vld [vmem:[%s6] sm:$0xf]
        %671 = vset.pattern.permute.xlu0 0
        %672 = vperm.xlu0 %671, %v669
        %v673 = vpop.permute.xlu0 %672
        %v675 = vadd.f32 %v647, %v673
        %v676 = vadd.f32 %v667, %v673
        %v677 = vld [vmem:[%s7] sm:$0xf]
        %v678 = vld [vmem:[#allocation7] sm:$0xf]
        %v680 = vsel %vm443, %v678, 0
        %682 = vmatpush.msra.mxu0 0.0
        %683 = vmatpush.msra.mxu0 0.0
        %684 = vmatpush.msra.mxu0 0.0
        %685 = vmatpush.msra.mxu0 0.0
        %686 = vmatpush.msra.mxu0 0.0
        %687 = vmatpush.msra.mxu0 0.0
        %688 = vmatpush.msra.mxu0 0.0
        %689 = vmatpush.msra.mxu0 0.0
        %690 = vmatpush.msra.mxu0 0.0
        %691 = vmatpush.msra.mxu0 0.0
        %692 = vmatpush.msra.mxu0 0.0
        %693 = vmatpush.msra.mxu0 0.0
        %694 = vmatpush.msra.mxu0 0.0
        %695 = vmatpush.msra.mxu0 0.0
        %696 = vmatpush.msra.mxu0 0.0
        %697 = vmatpush.msra.mxu0 %v575
        %698 = vmatmul.f32.gmra.mxu0 %v680
        %v699 = vpop.f32.mrf.mxu0
        %v700 = vadd.f32 0.0, %v699
        %701 = vdwg.mxu0
        %702 = vmatpush.msra.mxu0 0.0
        %703 = vmatpush.msra.mxu0 0.0
        %704 = vmatpush.msra.mxu0 0.0
        %705 = vmatpush.msra.mxu0 0.0
        %706 = vmatpush.msra.mxu0 0.0
        %707 = vmatpush.msra.mxu0 0.0
        %708 = vmatpush.msra.mxu0 0.0
        %709 = vmatpush.msra.mxu0 0.0
        %710 = vmatpush.msra.mxu0 0.0
        %711 = vmatpush.msra.mxu0 0.0
        %712 = vmatpush.msra.mxu0 0.0
        %713 = vmatpush.msra.mxu0 0.0
        %714 = vmatpush.msra.mxu0 0.0
        %715 = vmatpush.msra.mxu0 0.0
        %716 = vmatpush.msra.mxu0 0.0
        %717 = vmatpush.msra.mxu0 %v578
        %718 = vmatmul.f32.gmra.mxu0 %v680
        %v719 = vpop.f32.mrf.mxu0
        %v720 = vadd.f32 0.0, %v719
        %721 = vdwg.mxu0
        %v723 = vsel %vm443, %v677, 0
        %725 = vmatpush.msra.mxu0 0.0
        %726 = vmatpush.msra.mxu0 0.0
        %727 = vmatpush.msra.mxu0 0.0
        %728 = vmatpush.msra.mxu0 0.0
        %729 = vmatpush.msra.mxu0 0.0
        %730 = vmatpush.msra.mxu0 0.0
        %731 = vmatpush.msra.mxu0 0.0
        %732 = vmatpush.msra.mxu0 0.0
        %733 = vmatpush.msra.mxu0 0.0
        %734 = vmatpush.msra.mxu0 0.0
        %735 = vmatpush.msra.mxu0 0.0
        %736 = vmatpush.msra.mxu0 0.0
        %737 = vmatpush.msra.mxu0 0.0
        %738 = vmatpush.msra.mxu0 0.0
        %739 = vmatpush.msra.mxu0 0.0
        %740 = vmatpush.msra.mxu0 %v624
        %741 = vmatmul.f32.gmra.mxu0 %v723
        %v742 = vpop.f32.mrf.mxu0
        %v743 = vadd.f32 %v700, %v742
        %744 = vdwg.mxu0
        %745 = vmatpush.msra.mxu0 0.0
        %746 = vmatpush.msra.mxu0 0.0
        %747 = vmatpush.msra.mxu0 0.0
        %748 = vmatpush.msra.mxu0 0.0
        %749 = vmatpush.msra.mxu0 0.0
        %750 = vmatpush.msra.mxu0 0.0
        %751 = vmatpush.msra.mxu0 0.0
        %752 = vmatpush.msra.mxu0 0.0
        %753 = vmatpush.msra.mxu0 0.0
        %754 = vmatpush.msra.mxu0 0.0
        %755 = vmatpush.msra.mxu0 0.0
        %756 = vmatpush.msra.mxu0 0.0
        %757 = vmatpush.msra.mxu0 0.0
        %758 = vmatpush.msra.mxu0 0.0
        %759 = vmatpush.msra.mxu0 0.0
        %760 = vmatpush.msra.mxu0 %v627
        %761 = vmatmul.f32.gmra.mxu0 %v723
        %v762 = vpop.f32.mrf.mxu0
        %v763 = vadd.f32 %v720, %v762
        %764 = vdwg.mxu0
        %v765 = vld [vmem:[%s9] sm:$0xf]
        %767 = vset.pattern.permute.xlu0 0
        %768 = vperm.xlu0 %767, %v765
        %v769 = vpop.permute.xlu0 %768
        %v771 = vadd.f32 %v743, %v769
        %v772 = vadd.f32 %v763, %v769
        %v773 = vxor.u32 %v771, 2147483648
        %v774 = vxor.u32 %v772, 2147483648
        %v775 = vmul.f32 %v773, 1.442695
        %v776 = vpow.pop %v775
        %v777 = vmul.f32 %v774, 1.442695
        %v778 = vpow.pop %v777
        %v779 = vadd.f32 %v776, 1.0
        %v780 = vadd.f32 %v778, 1.0
        %v781 = vrcp.pop %v779
        %v782 = vmul.f32 %v779, %v781
        %v783 = vsub.f32 1.0, %v782
        %v784 = vmul.f32 %v781, %v783
        %v785 = vadd.f32 %v781, %v784
        %vm786 = vweird.f32 %v779
        %vm787 = vweird.f32 %v781
        %vm788 = vmor %vm786, %vm787
        %v789 = vsel %vm788, %v781, %v785
        %v790 = vand.u32 2147483647, %v779
        %vm791 = vcmp.eq.f32.partialorder %v790, 8.507059e+37
        %v792 = vand.u32 %v779, 2147483648
        %v793 = vor.u32 1.1754944e-38, %v792
        %v794 = vsel %vm791, %v793, %v789
        %v795 = vmul.f32 1.0, %v794
        %v796 = vrcp.pop %v780
        %v797 = vmul.f32 %v780, %v796
        %v798 = vsub.f32 1.0, %v797
        %v799 = vmul.f32 %v796, %v798
        %v800 = vadd.f32 %v796, %v799
        %vm801 = vweird.f32 %v780
        %vm802 = vweird.f32 %v796
        %vm803 = vmor %vm801, %vm802
        %v804 = vsel %vm803, %v796, %v800
        %v805 = vand.u32 2147483647, %v780
        %vm806 = vcmp.eq.f32.partialorder %v805, 8.507059e+37
        %v807 = vand.u32 %v780, 2147483648
        %v808 = vor.u32 1.1754944e-38, %v807
        %v809 = vsel %vm806, %v808, %v804
        %v810 = vmul.f32 1.0, %v809
        %v811 = vmul.f32 %v675, %v795
        %v812 = vmul.f32 %v676, %v810
        %v815 = vrot.slane %v812, 4
        %v816 = vsel %vm447, %v811, %v815
        %v818 = vadd.f32 %v427, %v816
        %819 = vst [vmem:[%s424] sm:$0xff] %v818
        %s820 = sand.u32 %s267, 1
        %s821 = scalar_lea.sflag [#allocation4], %s820
        %s822 = sand.u32 %s267, 1
        %s823 = smul.addr %s822, 8
        %s824 = scalar_lea.vmem [#allocation8], %s823
        // Predicated region
        $region73: #{tpu_custom_call.1} parent=59 // pred_check
          %p825 = pneg %p277
        $region74: #{tpu_custom_call.1} parent=59 // pred_check_branch
          %827 = sbr.rel (%p825) target = $region76
        $region75: #{tpu_custom_call.1} parent=59 // pred_region
          %s828 = smul.u32 2, %s33
          %830 = vsyncadd %s821, 0
          %s831 = smul.addr %s32, 2
          %s832 = sadd.s32 %s828, %s831
          %s833 = smul.addr %s832, 4
          %s834 = scalar_lea.hbm %s10, %s833
          %s836 = sshll.u32 %s824, 4
          %s837 = int_to_ptr.vmem [resolvable:$true] %s836
          %s838 = sshll.u32 %s834, 4
          %s839 = int_to_ptr.hbm [resolvable:$true] %s838
          %841 = dma.vmem_to_hbm [thread:$0]  %s837, 128, %s839, %s821
        $region76: #{tpu_custom_call.1} parent=59 // pred_fallthru
          _
      $region60: #{tpu_custom_call.1} parent=5 // pred_fallthru
        _
      %p842 = scmp.le.s32.totalorder 2, %s23
      // Predicated region
      $region77: #{tpu_custom_call.1} parent=5 // pred_check
        %p843 = pneg %p842
      $region78: #{tpu_custom_call.1} parent=5 // pred_check_branch
        %845 = sbr.rel (%p843) target = $region80
      $region79: #{tpu_custom_call.1} parent=5 // pred_region
        %s846 = ssub.s32 %s23, 2
        // Predicated region
        $region81: #{tpu_custom_call.1} parent=79 // pred_check
          %p847 = pneg %p283
        $region82: #{tpu_custom_call.1} parent=79 // pred_check_branch
          %849 = sbr.rel (%p847) target = $region84
        $region83: #{tpu_custom_call.1} parent=79 // pred_region
          %s850 = sand.u32 %s268, 1
          %s851 = scalar_lea.sflag [#allocation4], %s850
          %s852 = sand.u32 %s268, 1
          %s853 = smul.addr %s852, 8
          %s854 = scalar_lea.vmem [#allocation8], %s853
          %856 = dma.done %s851, 128
        $region84: #{tpu_custom_call.1} parent=79 // pred_fallthru
          _
      $region80: #{tpu_custom_call.1} parent=5 // pred_fallthru
        _
    $region6: #{tpu_custom_call.1} parent=1 // loop_footer
      %s27 = sadd.s32 1, %s23
    $region7: #{tpu_custom_call.1} parent=1 // loop_footer_branch
      %22 = sbr.rel target = $region3
    $region8: #{tpu_custom_call.1} parent=1 // loop_exit
      _
    %857 = vsyncpa [#allocation3], 1
    %s858 = scalar_lea.sflag [#allocation3], 1
    %859 = vsyncpa %s858, 1
    %860 = vsyncpa [#allocation6], 1
    %861 = vsyncpa [#allocation4], 1
    %s862 = scalar_lea.sflag [#allocation4], 1
    %863 = vsyncpa %s862, 1

</llo_original>
